<compile_context>
chip_gen: v5e
topology: v5e:2x2
jax: 0.10.0
libtpu: 0.0.40
codegen_flags: <defaults>
</compile_context>

<pallas_src>
import functools

import jax
import jax.numpy as jnp
from jax.experimental import pallas as pl
from jax.experimental.pallas import tpu as pltpu

HIDDEN = 32


def _round_up(n, m):
    return ((n + m - 1) // m) * m


def _cdiv(a, b):
    return (a + b - 1) // b


def _policy_kernel(x_ref, p_ref, o_ref, *, in_dim, n_actions):
    # x tile arrives in its natural [TILE_B, in_dim] layout; all matmul results
    # keep the batch on the LANE axis ([rows, TILE_B]) so stores are lane-dense.
    x = x_ref[...]                                   # [TILE_B, in_dim]
    slab = p_ref[...]                                # [HIDDEN, in_dim + 2*HIDDEN + 3]

    c = 0
    w1 = slab[:, c:c + in_dim]; c += in_dim          # [32, in_dim]
    b1 = slab[:, c:c + 1];      c += 1               # [32, 1]
    w2 = slab[:, c:c + HIDDEN]; c += HIDDEN          # [32, 32]
    b2 = slab[:, c:c + 1];      c += 1               # [32, 1]
    wm = slab[:n_actions, c:c + HIDDEN]; c += HIDDEN  # [n_actions, 32]
    bm = slab[:n_actions, c:c + 1]                   # [n_actions, 1]

    hi = jax.lax.Precision.HIGHEST
    # "NT" contraction: W1 [32, in_dim] x x [TILE_B, in_dim] -> [32, TILE_B].
    nt = (((1,), (1,)), ((), ()))
    h1 = jax.lax.dot_general(w1, x, nt, precision=hi,
                             preferred_element_type=jnp.float32) + b1
    h1 = jnp.maximum(h1, 0.0)                        # [32, TILE_B]

    h2 = jnp.dot(w2, h1, precision=hi, preferred_element_type=jnp.float32) + b2
    h2 = jnp.maximum(h2, 0.0)                        # [32, TILE_B]

    mean = jnp.dot(wm, h2, precision=hi, preferred_element_type=jnp.float32) + bm
    o_ref[...] = jnp.tanh(mean).astype(o_ref.dtype)  # [n_actions, TILE_B] lane-dense


def _choose_tile_b(B, tile_b):
    """Pick a lane-aligned batch tile (multiple of 128, or == B for tiny batches)."""
    if B <= 128:
        return B
    t = min(tile_b, _round_up(B, 128))
    # v7x has 2 TensorCores and only 'parallel' grid axes shard across them:
    # make sure mid-size batches produce at least 2 grid steps.
    t = min(t, max(128, _round_up(_cdiv(B, 2), 128)))
    return t


def pack_params(params):
    """Pack (W1,b1,W2,b2,Wm,bm) into a single [HIDDEN, in_dim + 2*HIDDEN + 3] slab."""
    w1, b1, w2, b2, wm, bm = params                   # torch layout: W [out, in], b [out, 1]
    n_actions = wm.shape[0]
    wm_p = jnp.zeros((HIDDEN, HIDDEN), wm.dtype).at[:n_actions].set(wm)
    bm_p = jnp.zeros((HIDDEN, 1), bm.dtype).at[:n_actions].set(bm)
    return jnp.concatenate([w1, b1, w2, b2, wm_p, bm_p], axis=1)


def a2c_policy_forward(x, param_slab, n_actions, *, tile_b=4096):
    """x: [B, in_dim]; param_slab from pack_params(); returns [B, n_actions]."""
    B, in_dim = x.shape
    slab_cols = in_dim + 2 * HIDDEN + 3
    assert param_slab.shape == (HIDDEN, slab_cols), param_slab.shape

    tb = _choose_tile_b(B, tile_b)
    num_tiles = _cdiv(B, tb)

    if num_tiles >= 3:
        # Deeper pipelining on the (only) streaming input; hides DMA latency.
        x_spec = pl.BlockSpec((tb, in_dim), lambda i: (i, 0),
                              pipeline_mode=pl.Buffered(3))
    else:
        x_spec = pl.BlockSpec((tb, in_dim), lambda i: (i, 0))

    kernel = functools.partial(_policy_kernel, in_dim=in_dim, n_actions=n_actions)

    out_t = pl.pallas_call(
        kernel,
        out_shape=jax.ShapeDtypeStruct((n_actions, B), jnp.float32),
        grid=(num_tiles,),
        in_specs=[
            x_spec,                                                   # streaming x tile
            pl.BlockSpec((HIDDEN, slab_cols), lambda i: (0, 0)),      # resident params
        ],
        out_specs=pl.BlockSpec((n_actions, tb), lambda i: (0, i)),
        compiler_params=pltpu.CompilerParams(
            dimension_semantics=("parallel",)),
    )(x, param_slab)

    return out_t.T                                    # tiny [n_actions, B] -> [B, n_actions]


def init_params(key, in_dim, n_actions):
    """Mimic torch.nn.Linear defaults (uniform +/- 1/sqrt(fan_in)); mean_l weights *= 0.1."""
    ks = jax.random.split(key, 6)

    def lin(kw, kb, fan_in, fan_out):
        bound = 1.0 / jnp.sqrt(jnp.float32(fan_in))
        w = jax.random.uniform(kw, (fan_out, fan_in), jnp.float32, -bound, bound)
        b = jax.random.uniform(kb, (fan_out, 1), jnp.float32, -bound, bound)
        return w, b

    w1, b1 = lin(ks[0], ks[1], in_dim, HIDDEN)
    w2, b2 = lin(ks[2], ks[3], HIDDEN, HIDDEN)
    wm, bm = lin(ks[4], ks[5], HIDDEN, n_actions)
    wm = wm * 0.1                                     # self.mean_l.weight.data.mul_(0.1)
    # TODO(synk): var_l and logstd are parameters of the torch module but are not
    # used in forward(), so they are not materialized here.
    return (w1, b1, w2, b2, wm, bm)


def reference_forward(x, params):
    w1, b1, w2, b2, wm, bm = params
    hi = jax.lax.Precision.HIGHEST
    xf = x.astype(jnp.float32)
    h1 = jnp.maximum(jnp.dot(xf, w1.T, precision=hi) + b1.T, 0.0)
    h2 = jnp.maximum(jnp.dot(h1, w2.T, precision=hi) + b2.T, 0.0)
    return jnp.tanh(jnp.dot(h2, wm.T, precision=hi) + bm.T)


if __name__ == "__main__":
    key = jax.random.PRNGKey(0)
    k_x, k_p = jax.random.split(key)

    # BipedalWalker: observation dim 24, action dim 4; small batch of 8.
    batch, in_dim, n_actions = 8, 24, 4
    x = jax.random.normal(k_x, (batch, in_dim), dtype=jnp.float32)
    params = init_params(k_p, in_dim, n_actions)
    slab = pack_params(params)

    fwd = jax.jit(functools.partial(a2c_policy_forward, n_actions=n_actions))
    out = jax.block_until_ready(fwd(x, slab))

    ref = reference_forward(x, params)
    assert out.shape == (batch, n_actions), out.shape
    assert jnp.allclose(out, ref, atol=1e-5, rtol=1e-5), "mismatch vs reference"

    print("KERNEL_OK")
</pallas_src>

<mosaic_0001>
module attributes {stable_mosaic.version = 11 : i64} {
  func.func @_policy_kernel(%arg0: i32, %arg1: memref<8x24xf32, #tpu.memory_space<vmem>>, %arg2: memref<32x91xf32, #tpu.memory_space<vmem>>, %arg3: memref<4x8xf32, #tpu.memory_space<vmem>>) attributes {dimension_semantics = [#tpu.dimension_semantics<parallel>], iteration_bounds = array<i64: 1>, scalar_prefetch = 0 : i64, scratch_operands = 0 : i64, tpu.core_type = #tpu.core_type<tc>, window_params = [{transform_indices = @transform_0, window_bounds = array<i64: 8, 24>}, {pipeline_mode = #tpu.pipeline_mode<synchronous>, transform_indices = @transform_1, window_bounds = array<i64: 32, 91>}, {transform_indices = @transform_2, window_bounds = array<i64: 4, 8>}]} {
    %c0 = arith.constant 0 : index
    %c0_0 = arith.constant 0 : index
    %0 = vector.load %arg1[%c0, %c0_0] : memref<8x24xf32, #tpu.memory_space<vmem>>, vector<8x24xf32>
    %c0_1 = arith.constant 0 : index
    %c0_2 = arith.constant 0 : index
    %1 = vector.load %arg2[%c0_1, %c0_2] : memref<32x91xf32, #tpu.memory_space<vmem>>, vector<32x91xf32>
    %2 = vector.extract_strided_slice %1 {offsets = [0, 0], sizes = [32, 24], strides = [1, 1]} : vector<32x91xf32> to vector<32x24xf32>
    %3 = vector.extract_strided_slice %1 {offsets = [0, 24], sizes = [32, 1], strides = [1, 1]} : vector<32x91xf32> to vector<32x1xf32>
    %4 = vector.extract_strided_slice %1 {offsets = [0, 25], sizes = [32, 32], strides = [1, 1]} : vector<32x91xf32> to vector<32x32xf32>
    %5 = vector.extract_strided_slice %1 {offsets = [0, 57], sizes = [32, 1], strides = [1, 1]} : vector<32x91xf32> to vector<32x1xf32>
    %6 = vector.extract_strided_slice %1 {offsets = [0, 58], sizes = [4, 32], strides = [1, 1]} : vector<32x91xf32> to vector<4x32xf32>
    %7 = vector.extract_strided_slice %1 {offsets = [0, 90], sizes = [4, 1], strides = [1, 1]} : vector<32x91xf32> to vector<4x1xf32>
    %cst = arith.constant dense<0.000000e+00> : vector<32x8xf32>
    %8 = tpu.matmul %2, %0, %cst {dimension_numbers = #tpu.dot_dimension_numbers<[1], [1], [0], [0], [0, 0, 1, 0], [], []>, precision = #tpu.contract_precision<fp32>} : vector<32x24xf32>, vector<8x24xf32>, vector<32x8xf32> -> vector<32x8xf32>
    %9 = vector.broadcast %3 : vector<32x1xf32> to vector<32x8xf32>
    %10 = arith.addf %8, %9 : vector<32x8xf32>
    %cst_3 = arith.constant 0.000000e+00 : f32
    %11 = vector.broadcast %cst_3 : f32 to vector<32x8xf32>
    %12 = arith.maximumf %10, %11 : vector<32x8xf32>
    %cst_4 = arith.constant dense<0.000000e+00> : vector<32x8xf32>
    %13 = tpu.matmul %4, %12, %cst_4 {dimension_numbers = #tpu.dot_dimension_numbers<[1], [0], [0], [1], [0, 0, 1, 1], [], []>, precision = #tpu.contract_precision<fp32>} : vector<32x32xf32>, vector<32x8xf32>, vector<32x8xf32> -> vector<32x8xf32>
    %14 = vector.broadcast %5 : vector<32x1xf32> to vector<32x8xf32>
    %15 = arith.addf %13, %14 : vector<32x8xf32>
    %cst_5 = arith.constant 0.000000e+00 : f32
    %16 = vector.broadcast %cst_5 : f32 to vector<32x8xf32>
    %17 = arith.maximumf %15, %16 : vector<32x8xf32>
    %cst_6 = arith.constant dense<0.000000e+00> : vector<4x8xf32>
    %18 = tpu.matmul %6, %17, %cst_6 {dimension_numbers = #tpu.dot_dimension_numbers<[1], [0], [0], [1], [0, 0, 1, 1], [], []>, precision = #tpu.contract_precision<fp32>} : vector<4x32xf32>, vector<32x8xf32>, vector<4x8xf32> -> vector<4x8xf32>
    %19 = vector.broadcast %7 : vector<4x1xf32> to vector<4x8xf32>
    %20 = arith.addf %18, %19 : vector<4x8xf32>
    %21 = math.tanh %20 : vector<4x8xf32>
    %c0_7 = arith.constant 0 : index
    %c0_8 = arith.constant 0 : index
    %22 = vector.load %arg3[%c0_7, %c0_8] : memref<4x8xf32, #tpu.memory_space<vmem>>, vector<4x8xf32>
    tpu.vector_store %arg3[%c0_7, %c0_8], %21 {strides = array<i32>} : memref<4x8xf32, #tpu.memory_space<vmem>>, vector<4x8xf32>,
    return
  }
  func.func @transform_0(%arg0: i32) -> (i32, i32) {
    %c0_i32 = arith.constant 0 : i32
    %c0_i32_0 = arith.constant 0 : i32
    return %arg0, %c0_i32 : i32, i32
  }
  func.func @transform_1(%arg0: i32) -> (i32, i32) {
    %c0_i32 = arith.constant 0 : i32
    %c0_i32_0 = arith.constant 0 : i32
    %c0_i32_1 = arith.constant 0 : i32
    return %c0_i32, %c0_i32_0 : i32, i32
  }
  func.func @transform_2(%arg0: i32) -> (i32, i32) {
    %c0_i32 = arith.constant 0 : i32
    %c0_i32_0 = arith.constant 0 : i32
    return %c0_i32, %arg0 : i32, i32
  }
}

</mosaic_0001>

<llo_original>
// kernel: a2c_policy_forward.1
$region0: #{a2c_policy_forward.1}
  #allocation0 [shape = 'u32[]', space=smem, size = 0x4, offset = 0x4, fixed_abs, tag = 'smem constant byte address 0x4 - core index']
  #allocation1 [shape = 'u32[72,128]{1,0:T(1,128)}', space=vmem, size = 0x9000, scoped, tag = 'internal scratch']
  %s0 = inlined_call_operand.hbm [shape: f32[8,24], index: 0, kind: input, shape index: {}]
  %s1 = inlined_call_operand.hbm [shape: f32[32,91], index: 1, kind: input, shape index: {}]
  %s2 = inlined_call_operand.hbm [shape: f32[4,8], index: 2, kind: output, shape index: {}]
  %s3 = sld [smem:[#allocation0]]
  $region26: #{a2c_policy_forward.1} parent=0
    _
  %s5 = ssub.s32 1, %s3
  %s6 = scalar_select 0, %s5, %s3
  $region1: #{a2c_policy_forward.1} parent=0
    #allocation2 [shape = 'u8[4096]{0}', space=vmem, size = 0x1000, scoped, tag = 'input window, operand 0, single buffered']
    #allocation3 [shape = 's32[1]{0}', space=sflag, size = 0x4, scoped, tag = 'scoped memory for a2c_policy_forward.1']
    #allocation4 [shape = 's32[1]{0}', space=sflag, size = 0x4, scoped, tag = 'scoped memory for a2c_policy_forward.1']
    #allocation5 [shape = 'u8[16384]{0}', space=vmem, size = 0x4000, scoped, tag = 'input window, operand 1, single buffered']
    #allocation6 [shape = 's32[1]{0}', space=sflag, size = 0x4, scoped, tag = 'scoped memory for a2c_policy_forward.1']
    #allocation7 [shape = 'u8[2048]{0}', space=vmem, size = 0x800, scoped, tag = 'output window, operand 0, single buffered']
    %7 = vsyncpa [#allocation3], 0
    %8 = vsyncpa [#allocation6], 0
    %9 = vsyncpa [#allocation4], 0
    // Predicated region
    $region2: #{a2c_policy_forward.1} parent=1 // pred_check
      _
    $region3: #{a2c_policy_forward.1} parent=1 // pred_check_branch
      %11 = sbr.rel (0) target = $region5
    $region4: #{a2c_policy_forward.1} parent=1 // pred_region
      %13 = vsyncadd [#allocation3], 0
      %s15 = sshll.u32 %s0, 4
      %s16 = int_to_ptr.hbm [resolvable:$true] %s15
      %s17 = sshll.u32 [#allocation2], 4
      %s18 = int_to_ptr.vmem [resolvable:$true] %s17
      %20 = dma.hbm_to_vmem [thread:$0]  %s16, 128, %s18, [#allocation3]
    $region5: #{a2c_policy_forward.1} parent=1 // pred_fallthru
      _
    // Predicated region
    $region6: #{a2c_policy_forward.1} parent=1 // pred_check
      _
    $region7: #{a2c_policy_forward.1} parent=1 // pred_check_branch
      %22 = sbr.rel (0) target = $region9
    $region8: #{a2c_policy_forward.1} parent=1 // pred_region
      %24 = vsyncadd [#allocation6], 0
      %s25 = sshll.u32 %s1, 4
      %s26 = int_to_ptr.hbm [resolvable:$true] %s25
      %s27 = sshll.u32 [#allocation5], 4
      %s28 = int_to_ptr.vmem [resolvable:$true] %s27
      %33 = dma.hbm_to_vmem [thread:$0]  %s26, 512, %s28, [#allocation6], 128, 128, 8
    $region9: #{a2c_policy_forward.1} parent=1 // pred_fallthru
      _
    // Predicated region
    $region10: #{a2c_policy_forward.1} parent=1 // pred_check
      _
    $region11: #{a2c_policy_forward.1} parent=1 // pred_check_branch
      %35 = sbr.rel (0) target = $region13
    $region12: #{a2c_policy_forward.1} parent=1 // pred_region
      %37 = dma.done [#allocation3], 128
    $region13: #{a2c_policy_forward.1} parent=1 // pred_fallthru
      _
    // Predicated region
    $region14: #{a2c_policy_forward.1} parent=1 // pred_check
      _
    $region15: #{a2c_policy_forward.1} parent=1 // pred_check_branch
      %39 = sbr.rel (0) target = $region17
    $region16: #{a2c_policy_forward.1} parent=1 // pred_region
      %41 = dma.done [#allocation6], 512
    $region17: #{a2c_policy_forward.1} parent=1 // pred_fallthru
      _
    %v42 = vld [vmem:[#allocation2] sm:$0xff]
    %v43 = vld [vmem:[#allocation5] sm:$0xff]
    %v44 = vld [vmem:[#allocation5 + $0x8] sm:$0xff]
    %v45 = vld [vmem:[#allocation5 + $0x10] sm:$0xff]
    %v46 = vld [vmem:[#allocation5 + $0x18] sm:$0xff]
    %48 = vset.pattern.permute.xlu0 24
    %49 = vperm.xlu0 %48, %v43
    %v50 = vpop.permute.xlu0 %49
    %53 = vset.pattern.permute.xlu0 24
    %54 = vperm.xlu0 %53, %v44
    %v55 = vpop.permute.xlu0 %54
    %58 = vset.pattern.permute.xlu0 24
    %59 = vperm.xlu0 %58, %v45
    %v60 = vpop.permute.xlu0 %59
    %63 = vset.pattern.permute.xlu0 24
    %64 = vperm.xlu0 %63, %v46
    %v65 = vpop.permute.xlu0 %64
    %vm67 = vcmask 195584
    %v68 = vsel %vm67, %v43, 0
    %v70 = vsel %vm67, %v44, 0
    %v72 = vsel %vm67, %v45, 0
    %v74 = vsel %vm67, %v46, 0
    %v77 = vsel %vm67, %v42, 0
    %79 = vmatpush.xpose.msra.mxu0 0.0
    %80 = vmatpush.xpose.msra.mxu0 0.0
    %81 = vmatpush.xpose.msra.mxu0 0.0
    %82 = vmatpush.xpose.msra.mxu0 0.0
    %83 = vmatpush.xpose.msra.mxu0 0.0
    %84 = vmatpush.xpose.msra.mxu0 0.0
    %85 = vmatpush.xpose.msra.mxu0 0.0
    %86 = vmatpush.xpose.msra.mxu0 0.0
    %87 = vmatpush.xpose.msra.mxu0 0.0
    %88 = vmatpush.xpose.msra.mxu0 0.0
    %89 = vmatpush.xpose.msra.mxu0 0.0
    %90 = vmatpush.xpose.msra.mxu0 0.0
    %91 = vmatpush.xpose.msra.mxu0 0.0
    %92 = vmatpush.xpose.msra.mxu0 0.0
    %93 = vmatpush.xpose.msra.mxu0 0.0
    %v94 = vand.u32 %v77, 4294901760
    %95 = vmatpush.xpose.msra.mxu0 %v94
    %v96 = vand.u32 %v68, 4294901760
    %v97 = vsub.f32 %v68, %v96
    %v98 = vand.u32 %v97, 4294901760
    %v99 = vsub.f32 %v97, %v98
    %v100 = vand.u32 %v99, 4294901760
    %101 = vmatmul.f32.gmra.mxu0 %v100
    %v102 = vpop.f32.mrf.mxu0
    %v103 = vadd.f32 %v50, %v102
    %v104 = vand.u32 %v70, 4294901760
    %v105 = vsub.f32 %v70, %v104
    %v106 = vand.u32 %v105, 4294901760
    %v107 = vsub.f32 %v105, %v106
    %v108 = vand.u32 %v107, 4294901760
    %109 = vmatmul.f32.gmra.mxu0 %v108
    %v110 = vpop.f32.mrf.mxu0
    %v111 = vadd.f32 %v55, %v110
    %v112 = vand.u32 %v72, 4294901760
    %v113 = vsub.f32 %v72, %v112
    %v114 = vand.u32 %v113, 4294901760
    %v115 = vsub.f32 %v113, %v114
    %v116 = vand.u32 %v115, 4294901760
    %117 = vmatmul.f32.gmra.mxu0 %v116
    %v118 = vpop.f32.mrf.mxu0
    %v119 = vadd.f32 %v60, %v118
    %v120 = vand.u32 %v74, 4294901760
    %v121 = vsub.f32 %v74, %v120
    %v122 = vand.u32 %v121, 4294901760
    %v123 = vsub.f32 %v121, %v122
    %v124 = vand.u32 %v123, 4294901760
    %125 = vmatmul.f32.gmra.mxu0 %v124
    %v126 = vpop.f32.mrf.mxu0
    %v127 = vadd.f32 %v65, %v126
    %128 = vdwg.mxu0
    %129 = vmatpush.xpose.msra.mxu0 0.0
    %130 = vmatpush.xpose.msra.mxu0 0.0
    %131 = vmatpush.xpose.msra.mxu0 0.0
    %132 = vmatpush.xpose.msra.mxu0 0.0
    %133 = vmatpush.xpose.msra.mxu0 0.0
    %134 = vmatpush.xpose.msra.mxu0 0.0
    %135 = vmatpush.xpose.msra.mxu0 0.0
    %136 = vmatpush.xpose.msra.mxu0 0.0
    %137 = vmatpush.xpose.msra.mxu0 0.0
    %138 = vmatpush.xpose.msra.mxu0 0.0
    %139 = vmatpush.xpose.msra.mxu0 0.0
    %140 = vmatpush.xpose.msra.mxu0 0.0
    %141 = vmatpush.xpose.msra.mxu0 0.0
    %142 = vmatpush.xpose.msra.mxu0 0.0
    %143 = vmatpush.xpose.msra.mxu0 0.0
    %v144 = vand.u32 %v77, 4294901760
    %v145 = vsub.f32 %v77, %v144
    %v146 = vand.u32 %v145, 4294901760
    %v147 = vsub.f32 %v145, %v146
    %v148 = vand.u32 %v147, 4294901760
    %149 = vmatpush.xpose.msra.mxu0 %v148
    %v150 = vand.u32 %v68, 4294901760
    %151 = vmatmul.f32.gmra.mxu0 %v150
    %v152 = vpop.f32.mrf.mxu0
    %v153 = vadd.f32 %v103, %v152
    %v154 = vand.u32 %v70, 4294901760
    %155 = vmatmul.f32.gmra.mxu0 %v154
    %v156 = vpop.f32.mrf.mxu0
    %v157 = vadd.f32 %v111, %v156
    %v158 = vand.u32 %v72, 4294901760
    %159 = vmatmul.f32.gmra.mxu0 %v158
    %v160 = vpop.f32.mrf.mxu0
    %v161 = vadd.f32 %v119, %v160
    %v162 = vand.u32 %v74, 4294901760
    %163 = vmatmul.f32.gmra.mxu0 %v162
    %v164 = vpop.f32.mrf.mxu0
    %v165 = vadd.f32 %v127, %v164
    %166 = vdwg.mxu0
    %167 = vmatpush.xpose.msra.mxu0 0.0
    %168 = vmatpush.xpose.msra.mxu0 0.0
    %169 = vmatpush.xpose.msra.mxu0 0.0
    %170 = vmatpush.xpose.msra.mxu0 0.0
    %171 = vmatpush.xpose.msra.mxu0 0.0
    %172 = vmatpush.xpose.msra.mxu0 0.0
    %173 = vmatpush.xpose.msra.mxu0 0.0
    %174 = vmatpush.xpose.msra.mxu0 0.0
    %175 = vmatpush.xpose.msra.mxu0 0.0
    %176 = vmatpush.xpose.msra.mxu0 0.0
    %177 = vmatpush.xpose.msra.mxu0 0.0
    %178 = vmatpush.xpose.msra.mxu0 0.0
    %179 = vmatpush.xpose.msra.mxu0 0.0
    %180 = vmatpush.xpose.msra.mxu0 0.0
    %181 = vmatpush.xpose.msra.mxu0 0.0
    %v182 = vand.u32 %v77, 4294901760
    %v183 = vsub.f32 %v77, %v182
    %184 = vmatpush.xpose.msra.mxu0 %v183
    %v185 = vand.u32 %v68, 4294901760
    %v186 = vsub.f32 %v68, %v185
    %187 = vmatmul.f32.gmra.mxu0 %v186
    %v188 = vpop.f32.mrf.mxu0
    %v189 = vadd.f32 %v153, %v188
    %v190 = vand.u32 %v70, 4294901760
    %v191 = vsub.f32 %v70, %v190
    %192 = vmatmul.f32.gmra.mxu0 %v191
    %v193 = vpop.f32.mrf.mxu0
    %v194 = vadd.f32 %v157, %v193
    %v195 = vand.u32 %v72, 4294901760
    %v196 = vsub.f32 %v72, %v195
    %197 = vmatmul.f32.gmra.mxu0 %v196
    %v198 = vpop.f32.mrf.mxu0
    %v199 = vadd.f32 %v161, %v198
    %v200 = vand.u32 %v74, 4294901760
    %v201 = vsub.f32 %v74, %v200
    %202 = vmatmul.f32.gmra.mxu0 %v201
    %v203 = vpop.f32.mrf.mxu0
    %v204 = vadd.f32 %v165, %v203
    %205 = vdwg.mxu0
    %206 = vmatpush.xpose.msra.mxu0 0.0
    %207 = vmatpush.xpose.msra.mxu0 0.0
    %208 = vmatpush.xpose.msra.mxu0 0.0
    %209 = vmatpush.xpose.msra.mxu0 0.0
    %210 = vmatpush.xpose.msra.mxu0 0.0
    %211 = vmatpush.xpose.msra.mxu0 0.0
    %212 = vmatpush.xpose.msra.mxu0 0.0
    %213 = vmatpush.xpose.msra.mxu0 0.0
    %214 = vmatpush.xpose.msra.mxu0 0.0
    %215 = vmatpush.xpose.msra.mxu0 0.0
    %216 = vmatpush.xpose.msra.mxu0 0.0
    %217 = vmatpush.xpose.msra.mxu0 0.0
    %218 = vmatpush.xpose.msra.mxu0 0.0
    %219 = vmatpush.xpose.msra.mxu0 0.0
    %220 = vmatpush.xpose.msra.mxu0 0.0
    %v221 = vand.u32 %v77, 4294901760
    %222 = vmatpush.xpose.msra.mxu0 %v221
    %v223 = vand.u32 %v68, 4294901760
    %v224 = vsub.f32 %v68, %v223
    %v225 = vand.u32 %v224, 4294901760
    %226 = vmatmul.f32.gmra.mxu0 %v225
    %v227 = vpop.f32.mrf.mxu0
    %v228 = vadd.f32 %v189, %v227
    %v229 = vand.u32 %v70, 4294901760
    %v230 = vsub.f32 %v70, %v229
    %v231 = vand.u32 %v230, 4294901760
    %232 = vmatmul.f32.gmra.mxu0 %v231
    %v233 = vpop.f32.mrf.mxu0
    %v234 = vadd.f32 %v194, %v233
    %v235 = vand.u32 %v72, 4294901760
    %v236 = vsub.f32 %v72, %v235
    %v237 = vand.u32 %v236, 4294901760
    %238 = vmatmul.f32.gmra.mxu0 %v237
    %v239 = vpop.f32.mrf.mxu0
    %v240 = vadd.f32 %v199, %v239
    %v241 = vand.u32 %v74, 4294901760
    %v242 = vsub.f32 %v74, %v241
    %v243 = vand.u32 %v242, 4294901760
    %244 = vmatmul.f32.gmra.mxu0 %v243
    %v245 = vpop.f32.mrf.mxu0
    %v246 = vadd.f32 %v204, %v245
    %247 = vdwg.mxu0
    %248 = vmatpush.xpose.msra.mxu0 0.0
    %249 = vmatpush.xpose.msra.mxu0 0.0
    %250 = vmatpush.xpose.msra.mxu0 0.0
    %251 = vmatpush.xpose.msra.mxu0 0.0
    %252 = vmatpush.xpose.msra.mxu0 0.0
    %253 = vmatpush.xpose.msra.mxu0 0.0
    %254 = vmatpush.xpose.msra.mxu0 0.0
    %255 = vmatpush.xpose.msra.mxu0 0.0
    %256 = vmatpush.xpose.msra.mxu0 0.0
    %257 = vmatpush.xpose.msra.mxu0 0.0
    %258 = vmatpush.xpose.msra.mxu0 0.0
    %259 = vmatpush.xpose.msra.mxu0 0.0
    %260 = vmatpush.xpose.msra.mxu0 0.0
    %261 = vmatpush.xpose.msra.mxu0 0.0
    %262 = vmatpush.xpose.msra.mxu0 0.0
    %v263 = vand.u32 %v77, 4294901760
    %v264 = vsub.f32 %v77, %v263
    %v265 = vand.u32 %v264, 4294901760
    %266 = vmatpush.xpose.msra.mxu0 %v265
    %v267 = vand.u32 %v68, 4294901760
    %268 = vmatmul.f32.gmra.mxu0 %v267
    %v269 = vpop.f32.mrf.mxu0
    %v270 = vadd.f32 %v228, %v269
    %v271 = vand.u32 %v70, 4294901760
    %272 = vmatmul.f32.gmra.mxu0 %v271
    %v273 = vpop.f32.mrf.mxu0
    %v274 = vadd.f32 %v234, %v273
    %v275 = vand.u32 %v72, 4294901760
    %276 = vmatmul.f32.gmra.mxu0 %v275
    %v277 = vpop.f32.mrf.mxu0
    %v278 = vadd.f32 %v240, %v277
    %v279 = vand.u32 %v74, 4294901760
    %280 = vmatmul.f32.gmra.mxu0 %v279
    %v281 = vpop.f32.mrf.mxu0
    %v282 = vadd.f32 %v246, %v281
    %283 = vdwg.mxu0
    %284 = vmatpush.xpose.msra.mxu0 0.0
    %285 = vmatpush.xpose.msra.mxu0 0.0
    %286 = vmatpush.xpose.msra.mxu0 0.0
    %287 = vmatpush.xpose.msra.mxu0 0.0
    %288 = vmatpush.xpose.msra.mxu0 0.0
    %289 = vmatpush.xpose.msra.mxu0 0.0
    %290 = vmatpush.xpose.msra.mxu0 0.0
    %291 = vmatpush.xpose.msra.mxu0 0.0
    %292 = vmatpush.xpose.msra.mxu0 0.0
    %293 = vmatpush.xpose.msra.mxu0 0.0
    %294 = vmatpush.xpose.msra.mxu0 0.0
    %295 = vmatpush.xpose.msra.mxu0 0.0
    %296 = vmatpush.xpose.msra.mxu0 0.0
    %297 = vmatpush.xpose.msra.mxu0 0.0
    %298 = vmatpush.xpose.msra.mxu0 0.0
    %v299 = vand.u32 %v77, 4294901760
    %300 = vmatpush.xpose.msra.mxu0 %v299
    %v301 = vand.u32 %v68, 4294901760
    %302 = vmatmul.f32.gmra.mxu0 %v301
    %v303 = vpop.f32.mrf.mxu0
    %v304 = vadd.f32 %v270, %v303
    %v305 = vand.u32 %v70, 4294901760
    %306 = vmatmul.f32.gmra.mxu0 %v305
    %v307 = vpop.f32.mrf.mxu0
    %v308 = vadd.f32 %v274, %v307
    %v309 = vand.u32 %v72, 4294901760
    %310 = vmatmul.f32.gmra.mxu0 %v309
    %v311 = vpop.f32.mrf.mxu0
    %v312 = vadd.f32 %v278, %v311
    %v313 = vand.u32 %v74, 4294901760
    %314 = vmatmul.f32.gmra.mxu0 %v313
    %v315 = vpop.f32.mrf.mxu0
    %v316 = vadd.f32 %v282, %v315
    %317 = vdwg.mxu0
    %v318 = vmax.f32 %v304, 0.0
    %v319 = vmax.f32 %v308, 0.0
    %v320 = vmax.f32 %v312, 0.0
    %v321 = vmax.f32 %v316, 0.0
    %322 = vset.pattern.permute.xlu0 57
    %323 = vperm.xlu0 %322, %v43
    %v324 = vpop.permute.xlu0 %323
    %326 = vset.pattern.permute.xlu0 57
    %327 = vperm.xlu0 %326, %v44
    %v328 = vpop.permute.xlu0 %327
    %330 = vset.pattern.permute.xlu0 57
    %331 = vperm.xlu0 %330, %v45
    %v332 = vpop.permute.xlu0 %331
    %334 = vset.pattern.permute.xlu0 57
    %335 = vperm.xlu0 %334, %v46
    %v336 = vpop.permute.xlu0 %335
    %338 = vrot.lane.b32.xlu0 %v43, 103
    %v339 = vpop.permute.xlu0 %338
    %340 = vrot.lane.b32.xlu0 %v44, 103
    %v341 = vpop.permute.xlu0 %340
    %342 = vrot.lane.b32.xlu0 %v45, 103
    %v343 = vpop.permute.xlu0 %342
    %344 = vrot.lane.b32.xlu0 %v46, 103
    %v345 = vpop.permute.xlu0 %344
    %vm346 = vcmask 261120
    %v347 = vsel %vm346, %v339, 0
    %v349 = vsel %vm346, %v341, 0
    %v351 = vsel %vm346, %v343, 0
    %v353 = vsel %vm346, %v345, 0
    %355 = vmatpush.msra.mxu0 0.0
    %356 = vmatpush.msra.mxu0 0.0
    %357 = vmatpush.msra.mxu0 0.0
    %358 = vmatpush.msra.mxu0 0.0
    %359 = vmatpush.msra.mxu0 0.0
    %360 = vmatpush.msra.mxu0 0.0
    %361 = vmatpush.msra.mxu0 0.0
    %362 = vmatpush.msra.mxu0 0.0
    %363 = vmatpush.msra.mxu0 0.0
    %364 = vmatpush.msra.mxu0 0.0
    %365 = vmatpush.msra.mxu0 0.0
    %366 = vmatpush.msra.mxu0 0.0
    %v367 = vand.u32 %v321, 4294901760
    %368 = vmatpush.msra.mxu0 %v367
    %v369 = vand.u32 %v320, 4294901760
    %370 = vmatpush.msra.mxu0 %v369
    %v371 = vand.u32 %v319, 4294901760
    %372 = vmatpush.msra.mxu0 %v371
    %v373 = vand.u32 %v318, 4294901760
    %374 = vmatpush.msra.mxu0 %v373
    %v375 = vand.u32 %v347, 4294901760
    %v376 = vsub.f32 %v347, %v375
    %v377 = vand.u32 %v376, 4294901760
    %v378 = vsub.f32 %v376, %v377
    %v379 = vand.u32 %v378, 4294901760
    %380 = vmatmul.f32.gmra.mxu0 %v379
    %v381 = vpop.f32.mrf.mxu0
    %v382 = vadd.f32 %v324, %v381
    %v383 = vand.u32 %v349, 4294901760
    %v384 = vsub.f32 %v349, %v383
    %v385 = vand.u32 %v384, 4294901760
    %v386 = vsub.f32 %v384, %v385
    %v387 = vand.u32 %v386, 4294901760
    %388 = vmatmul.f32.gmra.mxu0 %v387
    %v389 = vpop.f32.mrf.mxu0
    %v390 = vadd.f32 %v328, %v389
    %v391 = vand.u32 %v351, 4294901760
    %v392 = vsub.f32 %v351, %v391
    %v393 = vand.u32 %v392, 4294901760
    %v394 = vsub.f32 %v392, %v393
    %v395 = vand.u32 %v394, 4294901760
    %396 = vmatmul.f32.gmra.mxu0 %v395
    %v397 = vpop.f32.mrf.mxu0
    %v398 = vadd.f32 %v332, %v397
    %v399 = vand.u32 %v353, 4294901760
    %v400 = vsub.f32 %v353, %v399
    %v401 = vand.u32 %v400, 4294901760
    %v402 = vsub.f32 %v400, %v401
    %v403 = vand.u32 %v402, 4294901760
    %404 = vmatmul.f32.gmra.mxu0 %v403
    %v405 = vpop.f32.mrf.mxu0
    %v406 = vadd.f32 %v336, %v405
    %407 = vdwg.mxu0
    %408 = vmatpush.msra.mxu0 0.0
    %409 = vmatpush.msra.mxu0 0.0
    %410 = vmatpush.msra.mxu0 0.0
    %411 = vmatpush.msra.mxu0 0.0
    %412 = vmatpush.msra.mxu0 0.0
    %413 = vmatpush.msra.mxu0 0.0
    %414 = vmatpush.msra.mxu0 0.0
    %415 = vmatpush.msra.mxu0 0.0
    %416 = vmatpush.msra.mxu0 0.0
    %417 = vmatpush.msra.mxu0 0.0
    %418 = vmatpush.msra.mxu0 0.0
    %419 = vmatpush.msra.mxu0 0.0
    %v420 = vand.u32 %v321, 4294901760
    %v421 = vsub.f32 %v321, %v420
    %v422 = vand.u32 %v421, 4294901760
    %v423 = vsub.f32 %v421, %v422
    %v424 = vand.u32 %v423, 4294901760
    %425 = vmatpush.msra.mxu0 %v424
    %v426 = vand.u32 %v320, 4294901760
    %v427 = vsub.f32 %v320, %v426
    %v428 = vand.u32 %v427, 4294901760
    %v429 = vsub.f32 %v427, %v428
    %v430 = vand.u32 %v429, 4294901760
    %431 = vmatpush.msra.mxu0 %v430
    %v432 = vand.u32 %v319, 4294901760
    %v433 = vsub.f32 %v319, %v432
    %v434 = vand.u32 %v433, 4294901760
    %v435 = vsub.f32 %v433, %v434
    %v436 = vand.u32 %v435, 4294901760
    %437 = vmatpush.msra.mxu0 %v436
    %v438 = vand.u32 %v318, 4294901760
    %v439 = vsub.f32 %v318, %v438
    %v440 = vand.u32 %v439, 4294901760
    %v441 = vsub.f32 %v439, %v440
    %v442 = vand.u32 %v441, 4294901760
    %443 = vmatpush.msra.mxu0 %v442
    %v444 = vand.u32 %v347, 4294901760
    %445 = vmatmul.f32.gmra.mxu0 %v444
    %v446 = vpop.f32.mrf.mxu0
    %v447 = vadd.f32 %v382, %v446
    %v448 = vand.u32 %v349, 4294901760
    %449 = vmatmul.f32.gmra.mxu0 %v448
    %v450 = vpop.f32.mrf.mxu0
    %v451 = vadd.f32 %v390, %v450
    %v452 = vand.u32 %v351, 4294901760
    %453 = vmatmul.f32.gmra.mxu0 %v452
    %v454 = vpop.f32.mrf.mxu0
    %v455 = vadd.f32 %v398, %v454
    %v456 = vand.u32 %v353, 4294901760
    %457 = vmatmul.f32.gmra.mxu0 %v456
    %v458 = vpop.f32.mrf.mxu0
    %v459 = vadd.f32 %v406, %v458
    %460 = vdwg.mxu0
    %461 = vmatpush.msra.mxu0 0.0
    %462 = vmatpush.msra.mxu0 0.0
    %463 = vmatpush.msra.mxu0 0.0
    %464 = vmatpush.msra.mxu0 0.0
    %465 = vmatpush.msra.mxu0 0.0
    %466 = vmatpush.msra.mxu0 0.0
    %467 = vmatpush.msra.mxu0 0.0
    %468 = vmatpush.msra.mxu0 0.0
    %469 = vmatpush.msra.mxu0 0.0
    %470 = vmatpush.msra.mxu0 0.0
    %471 = vmatpush.msra.mxu0 0.0
    %472 = vmatpush.msra.mxu0 0.0
    %v473 = vand.u32 %v321, 4294901760
    %v474 = vsub.f32 %v321, %v473
    %475 = vmatpush.msra.mxu0 %v474
    %v476 = vand.u32 %v320, 4294901760
    %v477 = vsub.f32 %v320, %v476
    %478 = vmatpush.msra.mxu0 %v477
    %v479 = vand.u32 %v319, 4294901760
    %v480 = vsub.f32 %v319, %v479
    %481 = vmatpush.msra.mxu0 %v480
    %v482 = vand.u32 %v318, 4294901760
    %v483 = vsub.f32 %v318, %v482
    %484 = vmatpush.msra.mxu0 %v483
    %v485 = vand.u32 %v347, 4294901760
    %v486 = vsub.f32 %v347, %v485
    %487 = vmatmul.f32.gmra.mxu0 %v486
    %v488 = vpop.f32.mrf.mxu0
    %v489 = vadd.f32 %v447, %v488
    %v490 = vand.u32 %v349, 4294901760
    %v491 = vsub.f32 %v349, %v490
    %492 = vmatmul.f32.gmra.mxu0 %v491
    %v493 = vpop.f32.mrf.mxu0
    %v494 = vadd.f32 %v451, %v493
    %v495 = vand.u32 %v351, 4294901760
    %v496 = vsub.f32 %v351, %v495
    %497 = vmatmul.f32.gmra.mxu0 %v496
    %v498 = vpop.f32.mrf.mxu0
    %v499 = vadd.f32 %v455, %v498
    %v500 = vand.u32 %v353, 4294901760
    %v501 = vsub.f32 %v353, %v500
    %502 = vmatmul.f32.gmra.mxu0 %v501
    %v503 = vpop.f32.mrf.mxu0
    %v504 = vadd.f32 %v459, %v503
    %505 = vdwg.mxu0
    %506 = vmatpush.msra.mxu0 0.0
    %507 = vmatpush.msra.mxu0 0.0
    %508 = vmatpush.msra.mxu0 0.0
    %509 = vmatpush.msra.mxu0 0.0
    %510 = vmatpush.msra.mxu0 0.0
    %511 = vmatpush.msra.mxu0 0.0
    %512 = vmatpush.msra.mxu0 0.0
    %513 = vmatpush.msra.mxu0 0.0
    %514 = vmatpush.msra.mxu0 0.0
    %515 = vmatpush.msra.mxu0 0.0
    %516 = vmatpush.msra.mxu0 0.0
    %517 = vmatpush.msra.mxu0 0.0
    %v518 = vand.u32 %v321, 4294901760
    %519 = vmatpush.msra.mxu0 %v518
    %v520 = vand.u32 %v320, 4294901760
    %521 = vmatpush.msra.mxu0 %v520
    %v522 = vand.u32 %v319, 4294901760
    %523 = vmatpush.msra.mxu0 %v522
    %v524 = vand.u32 %v318, 4294901760
    %525 = vmatpush.msra.mxu0 %v524
    %v526 = vand.u32 %v347, 4294901760
    %v527 = vsub.f32 %v347, %v526
    %v528 = vand.u32 %v527, 4294901760
    %529 = vmatmul.f32.gmra.mxu0 %v528
    %v530 = vpop.f32.mrf.mxu0
    %v531 = vadd.f32 %v489, %v530
    %v532 = vand.u32 %v349, 4294901760
    %v533 = vsub.f32 %v349, %v532
    %v534 = vand.u32 %v533, 4294901760
    %535 = vmatmul.f32.gmra.mxu0 %v534
    %v536 = vpop.f32.mrf.mxu0
    %v537 = vadd.f32 %v494, %v536
    %v538 = vand.u32 %v351, 4294901760
    %v539 = vsub.f32 %v351, %v538
    %v540 = vand.u32 %v539, 4294901760
    %541 = vmatmul.f32.gmra.mxu0 %v540
    %v542 = vpop.f32.mrf.mxu0
    %v543 = vadd.f32 %v499, %v542
    %v544 = vand.u32 %v353, 4294901760
    %v545 = vsub.f32 %v353, %v544
    %v546 = vand.u32 %v545, 4294901760
    %547 = vmatmul.f32.gmra.mxu0 %v546
    %v548 = vpop.f32.mrf.mxu0
    %v549 = vadd.f32 %v504, %v548
    %550 = vdwg.mxu0
    %551 = vmatpush.msra.mxu0 0.0
    %552 = vmatpush.msra.mxu0 0.0
    %553 = vmatpush.msra.mxu0 0.0
    %554 = vmatpush.msra.mxu0 0.0
    %555 = vmatpush.msra.mxu0 0.0
    %556 = vmatpush.msra.mxu0 0.0
    %557 = vmatpush.msra.mxu0 0.0
    %558 = vmatpush.msra.mxu0 0.0
    %559 = vmatpush.msra.mxu0 0.0
    %560 = vmatpush.msra.mxu0 0.0
    %561 = vmatpush.msra.mxu0 0.0
    %562 = vmatpush.msra.mxu0 0.0
    %v563 = vand.u32 %v321, 4294901760
    %v564 = vsub.f32 %v321, %v563
    %v565 = vand.u32 %v564, 4294901760
    %566 = vmatpush.msra.mxu0 %v565
    %v567 = vand.u32 %v320, 4294901760
    %v568 = vsub.f32 %v320, %v567
    %v569 = vand.u32 %v568, 4294901760
    %570 = vmatpush.msra.mxu0 %v569
    %v571 = vand.u32 %v319, 4294901760
    %v572 = vsub.f32 %v319, %v571
    %v573 = vand.u32 %v572, 4294901760
    %574 = vmatpush.msra.mxu0 %v573
    %v575 = vand.u32 %v318, 4294901760
    %v576 = vsub.f32 %v318, %v575
    %v577 = vand.u32 %v576, 4294901760
    %578 = vmatpush.msra.mxu0 %v577
    %v579 = vand.u32 %v347, 4294901760
    %580 = vmatmul.f32.gmra.mxu0 %v579
    %v581 = vpop.f32.mrf.mxu0
    %v582 = vadd.f32 %v531, %v581
    %v583 = vand.u32 %v349, 4294901760
    %584 = vmatmul.f32.gmra.mxu0 %v583
    %v585 = vpop.f32.mrf.mxu0
    %v586 = vadd.f32 %v537, %v585
    %v587 = vand.u32 %v351, 4294901760
    %588 = vmatmul.f32.gmra.mxu0 %v587
    %v589 = vpop.f32.mrf.mxu0
    %v590 = vadd.f32 %v543, %v589
    %v591 = vand.u32 %v353, 4294901760
    %592 = vmatmul.f32.gmra.mxu0 %v591
    %v593 = vpop.f32.mrf.mxu0
    %v594 = vadd.f32 %v549, %v593
    %595 = vdwg.mxu0
    %596 = vmatpush.msra.mxu0 0.0
    %597 = vmatpush.msra.mxu0 0.0
    %598 = vmatpush.msra.mxu0 0.0
    %599 = vmatpush.msra.mxu0 0.0
    %600 = vmatpush.msra.mxu0 0.0
    %601 = vmatpush.msra.mxu0 0.0
    %602 = vmatpush.msra.mxu0 0.0
    %603 = vmatpush.msra.mxu0 0.0
    %604 = vmatpush.msra.mxu0 0.0
    %605 = vmatpush.msra.mxu0 0.0
    %606 = vmatpush.msra.mxu0 0.0
    %607 = vmatpush.msra.mxu0 0.0
    %v608 = vand.u32 %v321, 4294901760
    %609 = vmatpush.msra.mxu0 %v608
    %v610 = vand.u32 %v320, 4294901760
    %611 = vmatpush.msra.mxu0 %v610
    %v612 = vand.u32 %v319, 4294901760
    %613 = vmatpush.msra.mxu0 %v612
    %v614 = vand.u32 %v318, 4294901760
    %615 = vmatpush.msra.mxu0 %v614
    %v616 = vand.u32 %v347, 4294901760
    %617 = vmatmul.f32.gmra.mxu0 %v616
    %v618 = vpop.f32.mrf.mxu0
    %v619 = vadd.f32 %v582, %v618
    %v620 = vand.u32 %v349, 4294901760
    %621 = vmatmul.f32.gmra.mxu0 %v620
    %v622 = vpop.f32.mrf.mxu0
    %v623 = vadd.f32 %v586, %v622
    %v624 = vand.u32 %v351, 4294901760
    %625 = vmatmul.f32.gmra.mxu0 %v624
    %v626 = vpop.f32.mrf.mxu0
    %v627 = vadd.f32 %v590, %v626
    %v628 = vand.u32 %v353, 4294901760
    %629 = vmatmul.f32.gmra.mxu0 %v628
    %v630 = vpop.f32.mrf.mxu0
    %v631 = vadd.f32 %v594, %v630
    %632 = vdwg.mxu0
    %v633 = vmax.f32 %v619, 0.0
    %v634 = vmax.f32 %v623, 0.0
    %v635 = vmax.f32 %v627, 0.0
    %v636 = vmax.f32 %v631, 0.0
    %637 = vset.pattern.permute.xlu0 90
    %638 = vperm.xlu0 %637, %v43
    %v639 = vpop.permute.xlu0 %638
    %641 = vrot.lane.b32.xlu0 %v43, 70
    %v642 = vpop.permute.xlu0 %641
    %v643 = vsel %vm346, %v642, 0
    %645 = vmatpush.msra.mxu0 0.0
    %646 = vmatpush.msra.mxu0 0.0
    %647 = vmatpush.msra.mxu0 0.0
    %648 = vmatpush.msra.mxu0 0.0
    %649 = vmatpush.msra.mxu0 0.0
    %650 = vmatpush.msra.mxu0 0.0
    %651 = vmatpush.msra.mxu0 0.0
    %652 = vmatpush.msra.mxu0 0.0
    %653 = vmatpush.msra.mxu0 0.0
    %654 = vmatpush.msra.mxu0 0.0
    %655 = vmatpush.msra.mxu0 0.0
    %656 = vmatpush.msra.mxu0 0.0
    %v657 = vand.u32 %v636, 4294901760
    %658 = vmatpush.msra.mxu0 %v657
    %v659 = vand.u32 %v635, 4294901760
    %660 = vmatpush.msra.mxu0 %v659
    %v661 = vand.u32 %v634, 4294901760
    %662 = vmatpush.msra.mxu0 %v661
    %v663 = vand.u32 %v633, 4294901760
    %664 = vmatpush.msra.mxu0 %v663
    %v665 = vand.u32 %v643, 4294901760
    %v666 = vsub.f32 %v643, %v665
    %v667 = vand.u32 %v666, 4294901760
    %v668 = vsub.f32 %v666, %v667
    %v669 = vand.u32 %v668, 4294901760
    %670 = vmatmul.f32.gmra.mxu0 %v669
    %v671 = vpop.f32.mrf.mxu0
    %v672 = vadd.f32 %v639, %v671
    %673 = vdwg.mxu0
    %674 = vmatpush.msra.mxu0 0.0
    %675 = vmatpush.msra.mxu0 0.0
    %676 = vmatpush.msra.mxu0 0.0
    %677 = vmatpush.msra.mxu0 0.0
    %678 = vmatpush.msra.mxu0 0.0
    %679 = vmatpush.msra.mxu0 0.0
    %680 = vmatpush.msra.mxu0 0.0
    %681 = vmatpush.msra.mxu0 0.0
    %682 = vmatpush.msra.mxu0 0.0
    %683 = vmatpush.msra.mxu0 0.0
    %684 = vmatpush.msra.mxu0 0.0
    %685 = vmatpush.msra.mxu0 0.0
    %v686 = vand.u32 %v636, 4294901760
    %v687 = vsub.f32 %v636, %v686
    %v688 = vand.u32 %v687, 4294901760
    %v689 = vsub.f32 %v687, %v688
    %v690 = vand.u32 %v689, 4294901760
    %691 = vmatpush.msra.mxu0 %v690
    %v692 = vand.u32 %v635, 4294901760
    %v693 = vsub.f32 %v635, %v692
    %v694 = vand.u32 %v693, 4294901760
    %v695 = vsub.f32 %v693, %v694
    %v696 = vand.u32 %v695, 4294901760
    %697 = vmatpush.msra.mxu0 %v696
    %v698 = vand.u32 %v634, 4294901760
    %v699 = vsub.f32 %v634, %v698
    %v700 = vand.u32 %v699, 4294901760
    %v701 = vsub.f32 %v699, %v700
    %v702 = vand.u32 %v701, 4294901760
    %703 = vmatpush.msra.mxu0 %v702
    %v704 = vand.u32 %v633, 4294901760
    %v705 = vsub.f32 %v633, %v704
    %v706 = vand.u32 %v705, 4294901760
    %v707 = vsub.f32 %v705, %v706
    %v708 = vand.u32 %v707, 4294901760
    %709 = vmatpush.msra.mxu0 %v708
    %v710 = vand.u32 %v643, 4294901760
    %711 = vmatmul.f32.gmra.mxu0 %v710
    %v712 = vpop.f32.mrf.mxu0
    %v713 = vadd.f32 %v672, %v712
    %714 = vdwg.mxu0
    %715 = vmatpush.msra.mxu0 0.0
    %716 = vmatpush.msra.mxu0 0.0
    %717 = vmatpush.msra.mxu0 0.0
    %718 = vmatpush.msra.mxu0 0.0
    %719 = vmatpush.msra.mxu0 0.0
    %720 = vmatpush.msra.mxu0 0.0
    %721 = vmatpush.msra.mxu0 0.0
    %722 = vmatpush.msra.mxu0 0.0
    %723 = vmatpush.msra.mxu0 0.0
    %724 = vmatpush.msra.mxu0 0.0
    %725 = vmatpush.msra.mxu0 0.0
    %726 = vmatpush.msra.mxu0 0.0
    %v727 = vand.u32 %v636, 4294901760
    %v728 = vsub.f32 %v636, %v727
    %729 = vmatpush.msra.mxu0 %v728
    %v730 = vand.u32 %v635, 4294901760
    %v731 = vsub.f32 %v635, %v730
    %732 = vmatpush.msra.mxu0 %v731
    %v733 = vand.u32 %v634, 4294901760
    %v734 = vsub.f32 %v634, %v733
    %735 = vmatpush.msra.mxu0 %v734
    %v736 = vand.u32 %v633, 4294901760
    %v737 = vsub.f32 %v633, %v736
    %738 = vmatpush.msra.mxu0 %v737
    %v739 = vand.u32 %v643, 4294901760
    %v740 = vsub.f32 %v643, %v739
    %741 = vmatmul.f32.gmra.mxu0 %v740
    %v742 = vpop.f32.mrf.mxu0
    %v743 = vadd.f32 %v713, %v742
    %744 = vdwg.mxu0
    %745 = vmatpush.msra.mxu0 0.0
    %746 = vmatpush.msra.mxu0 0.0
    %747 = vmatpush.msra.mxu0 0.0
    %748 = vmatpush.msra.mxu0 0.0
    %749 = vmatpush.msra.mxu0 0.0
    %750 = vmatpush.msra.mxu0 0.0
    %751 = vmatpush.msra.mxu0 0.0
    %752 = vmatpush.msra.mxu0 0.0
    %753 = vmatpush.msra.mxu0 0.0
    %754 = vmatpush.msra.mxu0 0.0
    %755 = vmatpush.msra.mxu0 0.0
    %756 = vmatpush.msra.mxu0 0.0
    %v757 = vand.u32 %v636, 4294901760
    %758 = vmatpush.msra.mxu0 %v757
    %v759 = vand.u32 %v635, 4294901760
    %760 = vmatpush.msra.mxu0 %v759
    %v761 = vand.u32 %v634, 4294901760
    %762 = vmatpush.msra.mxu0 %v761
    %v763 = vand.u32 %v633, 4294901760
    %764 = vmatpush.msra.mxu0 %v763
    %v765 = vand.u32 %v643, 4294901760
    %v766 = vsub.f32 %v643, %v765
    %v767 = vand.u32 %v766, 4294901760
    %768 = vmatmul.f32.gmra.mxu0 %v767
    %v769 = vpop.f32.mrf.mxu0
    %v770 = vadd.f32 %v743, %v769
    %771 = vdwg.mxu0
    %772 = vmatpush.msra.mxu0 0.0
    %773 = vmatpush.msra.mxu0 0.0
    %774 = vmatpush.msra.mxu0 0.0
    %775 = vmatpush.msra.mxu0 0.0
    %776 = vmatpush.msra.mxu0 0.0
    %777 = vmatpush.msra.mxu0 0.0
    %778 = vmatpush.msra.mxu0 0.0
    %779 = vmatpush.msra.mxu0 0.0
    %780 = vmatpush.msra.mxu0 0.0
    %781 = vmatpush.msra.mxu0 0.0
    %782 = vmatpush.msra.mxu0 0.0
    %783 = vmatpush.msra.mxu0 0.0
    %v784 = vand.u32 %v636, 4294901760
    %v785 = vsub.f32 %v636, %v784
    %v786 = vand.u32 %v785, 4294901760
    %787 = vmatpush.msra.mxu0 %v786
    %v788 = vand.u32 %v635, 4294901760
    %v789 = vsub.f32 %v635, %v788
    %v790 = vand.u32 %v789, 4294901760
    %791 = vmatpush.msra.mxu0 %v790
    %v792 = vand.u32 %v634, 4294901760
    %v793 = vsub.f32 %v634, %v792
    %v794 = vand.u32 %v793, 4294901760
    %795 = vmatpush.msra.mxu0 %v794
    %v796 = vand.u32 %v633, 4294901760
    %v797 = vsub.f32 %v633, %v796
    %v798 = vand.u32 %v797, 4294901760
    %799 = vmatpush.msra.mxu0 %v798
    %v800 = vand.u32 %v643, 4294901760
    %801 = vmatmul.f32.gmra.mxu0 %v800
    %v802 = vpop.f32.mrf.mxu0
    %v803 = vadd.f32 %v770, %v802
    %804 = vdwg.mxu0
    %805 = vmatpush.msra.mxu0 0.0
    %806 = vmatpush.msra.mxu0 0.0
    %807 = vmatpush.msra.mxu0 0.0
    %808 = vmatpush.msra.mxu0 0.0
    %809 = vmatpush.msra.mxu0 0.0
    %810 = vmatpush.msra.mxu0 0.0
    %811 = vmatpush.msra.mxu0 0.0
    %812 = vmatpush.msra.mxu0 0.0
    %813 = vmatpush.msra.mxu0 0.0
    %814 = vmatpush.msra.mxu0 0.0
    %815 = vmatpush.msra.mxu0 0.0
    %816 = vmatpush.msra.mxu0 0.0
    %v817 = vand.u32 %v636, 4294901760
    %818 = vmatpush.msra.mxu0 %v817
    %v819 = vand.u32 %v635, 4294901760
    %820 = vmatpush.msra.mxu0 %v819
    %v821 = vand.u32 %v634, 4294901760
    %822 = vmatpush.msra.mxu0 %v821
    %v823 = vand.u32 %v633, 4294901760
    %824 = vmatpush.msra.mxu0 %v823
    %v825 = vand.u32 %v643, 4294901760
    %826 = vmatmul.f32.gmra.mxu0 %v825
    %v827 = vpop.f32.mrf.mxu0
    %v828 = vadd.f32 %v803, %v827
    %829 = vdwg.mxu0
    %v830 = vtanh.pop %v828
    %vm831 = vcmask 60416
    %832 = vst.msk [vmem:[#allocation7] sm:$0xf] %vm831, %v830
    // Predicated region
    $region18: #{a2c_policy_forward.1} parent=1 // pred_check
      _
    $region19: #{a2c_policy_forward.1} parent=1 // pred_check_branch
      %834 = sbr.rel (0) target = $region21
    $region20: #{a2c_policy_forward.1} parent=1 // pred_region
      %836 = vsyncadd [#allocation4], 0
      %s838 = sshll.u32 [#allocation7], 4
      %s839 = int_to_ptr.vmem [resolvable:$true] %s838
      %s840 = sshll.u32 %s2, 4
      %s841 = int_to_ptr.hbm [resolvable:$true] %s840
      %843 = dma.vmem_to_hbm [thread:$0]  %s839, 64, %s841, [#allocation4]
    $region21: #{a2c_policy_forward.1} parent=1 // pred_fallthru
      _
    // Predicated region
    $region22: #{a2c_policy_forward.1} parent=1 // pred_check
      _
    $region23: #{a2c_policy_forward.1} parent=1 // pred_check_branch
      %845 = sbr.rel (0) target = $region25
    $region24: #{a2c_policy_forward.1} parent=1 // pred_region
      %847 = dma.done [#allocation4], 64
    $region25: #{a2c_policy_forward.1} parent=1 // pred_fallthru
      _
    %848 = vsyncpa [#allocation3], 1
    %849 = vsyncpa [#allocation6], 1
    %850 = vsyncpa [#allocation4], 1

</llo_original>
